<compile_context>
chip_gen: v7x
topology: tpu7x:2x2x1
jax: 0.10.0
libtpu: 0.0.40
codegen_flags: <defaults>
</compile_context>

<pallas_src>
import jax
import jax.numpy as jnp
from jax.experimental import pallas as pl
from jax.experimental.pallas import tpu as pltpu

IN_DIM = 200
HID_DIM = 100
HID_PAD = 128     # 100 -> 128 (lane multiple) on output dims only
NUM_HEADS = 2     # branch1 + branch2 fused


def _make_kernel(act_dtype):
    def _mlp_kernel(x_ref, w1_ref, b1_ref, w2_ref, b2_ref, wh_ref, bh_ref, out_ref):
        # One batch tile per grid step; weights are resident (constant block index).
        # bf16 cast of the streamed tile happens here (VPU), not as a separate HBM pass.
        x = x_ref[...].astype(jnp.bfloat16)                               # (TB, 200)

        # linear1: f32 MXU accumulate + f32 bias; tanh in act_dtype (bf16 on v6e/v7x, f32 on v5e)
        h = jnp.dot(x, w1_ref[...], preferred_element_type=jnp.float32) + b1_ref[...]
        h = jnp.tanh(h.astype(act_dtype)).astype(jnp.bfloat16)            # (TB, 128)

        # linear2 + tanh
        h = jnp.dot(h, w2_ref[...], preferred_element_type=jnp.float32) + b2_ref[...]
        h = jnp.tanh(h.astype(act_dtype)).astype(jnp.bfloat16)            # (TB, 128)

        # fused heads: one (128, 2) matmul instead of two N=1 matmuls
        o = jnp.dot(h, wh_ref[...], preferred_element_type=jnp.float32) + bh_ref[...]
        out_ref[...] = o.astype(out_ref.dtype)                            # (TB, 2)
    return _mlp_kernel


def _round_up(x, m):
    return ((x + m - 1) // m) * m


def _act_dtype_for_device():
    # bf16 tanh only where VPU/EUP have a bf16 path (v6e / v7x); f32 elsewhere (v5e and older).
    try:
        kind = jax.devices()[0].device_kind.lower()
    except Exception:
        return jnp.float32
    if any(tag in kind for tag in ("v2", "v3", "v4", "v5")):
        return jnp.float32
    return jnp.bfloat16


def _pad2(a, rows, cols):
    return jnp.pad(a, ((0, rows - a.shape[0]), (0, cols - a.shape[1])))


def neural_network_mod_forward(x, params, *, tile_b=4096):
    """x: (B, 200). params: dict of (in, out)-layout weights (PyTorch y = x @ W.T + b)."""
    B = x.shape[0]
    assert x.shape[1] == IN_DIM

    # --- batch tile / grid: big tiles amortize per-step overhead; >=2 steps for v7x megacore ---
    b_pad8 = _round_up(B, 8)
    tile_b = max(512, _round_up(tile_b, 512))
    if b_pad8 <= 1024:
        TB = b_pad8                                             # one small tile
    else:
        TB = min(tile_b, _round_up(pl.cdiv(b_pad8, 2), 512))    # >= 2 grid steps
    B_pad = _round_up(b_pad8, TB)
    grid = (B_pad // TB,)

    # --- pack / pad parameters (zero padding on padded output lanes keeps the math exact) ---
    w1 = _pad2(params["w1"], IN_DIM, HID_PAD).astype(jnp.bfloat16)       # (200, 128)
    b1 = _pad2(params["b1"], 1, HID_PAD).astype(jnp.float32)             # (1, 128)
    w2 = _pad2(params["w2"], HID_PAD, HID_PAD).astype(jnp.bfloat16)      # (128, 128)
    b2 = _pad2(params["b2"], 1, HID_PAD).astype(jnp.float32)             # (1, 128)
    wh = _pad2(jnp.concatenate([params["wb1"], params["wb2"]], axis=1),
               HID_PAD, NUM_HEADS).astype(jnp.bfloat16)                  # (128, 2)
    bh = jnp.concatenate([params["bb1"], params["bb2"]], axis=1).astype(jnp.float32)  # (1, 2)

    # Batch pad only; feature dim / dtype untouched so x streams directly from HBM.
    xp = x if B_pad == B else jnp.pad(x, ((0, B_pad - B), (0, 0)))

    const = lambda shape: pl.BlockSpec(shape, lambda i: (0, 0))
    kernel = _make_kernel(_act_dtype_for_device())

    out = pl.pallas_call(
        kernel,
        out_shape=jax.ShapeDtypeStruct((B_pad, NUM_HEADS), jnp.float32),
        grid=grid,
        in_specs=[
            pl.BlockSpec((TB, IN_DIM), lambda i: (i, 0)),   # x: streamed / double-buffered
            const(w1.shape), const(b1.shape),               # weights/biases: VMEM-resident
            const(w2.shape), const(b2.shape),
            const(wh.shape), const(bh.shape),
        ],
        out_specs=pl.BlockSpec((TB, NUM_HEADS), lambda i: (i, 0)),
        compiler_params=pltpu.CompilerParams(
            dimension_semantics=("parallel",),
            vmem_limit_bytes=32 * 1024 * 1024,   # headroom for f32 x tiles, safe on v5e/v6e/v7x
        ),
    )(xp, w1, b1, w2, b2, wh, bh)

    out = out[:B]
    return out[:, 0:1], out[:, 1:2]


def init_params(key):
    """Deterministic init mimicking nn.Linear (uniform +/- 1/sqrt(fan_in)); (in, out) layout."""
    def linear(k, fan_in, fan_out):
        kw, kb = jax.random.split(k)
        bound = 1.0 / jnp.sqrt(fan_in)
        w = jax.random.uniform(kw, (fan_in, fan_out), jnp.float32, -bound, bound)
        b = jax.random.uniform(kb, (1, fan_out), jnp.float32, -bound, bound)
        return w, b

    k1, k2, k3, k4 = jax.random.split(key, 4)
    w1, b1 = linear(k1, IN_DIM, HID_DIM)
    w2, b2 = linear(k2, HID_DIM, HID_DIM)
    wb1, bb1 = linear(k3, HID_DIM, 1)
    wb2, bb2 = linear(k4, HID_DIM, 1)
    return dict(w1=w1, b1=b1, w2=w2, b2=b2, wb1=wb1, bb1=bb1, wb2=wb2, bb2=bb2)


def reference_forward(x, p):
    h = jnp.tanh(x @ p["w1"] + p["b1"])
    h = jnp.tanh(h @ p["w2"] + p["b2"])
    return h @ p["wb1"] + p["bb1"], h @ p["wb2"] + p["bb2"]


if __name__ == "__main__":
    key = jax.random.PRNGKey(0)
    kx, kp = jax.random.split(key)

    B = 8
    x = jax.random.normal(kx, (B, IN_DIM), jnp.float32)
    params = init_params(kp)

    out1, out2 = neural_network_mod_forward(x, params)
    jax.block_until_ready((out1, out2))

    ref1, ref2 = reference_forward(x, params)
    assert out1.shape == (B, 1) and out2.shape == (B, 1)
    # bf16 matmul operands (f32 accumulation) + optional bf16 tanh => loosened tolerance.
    assert jnp.allclose(out1, ref1, atol=2e-2, rtol=2e-2)
    assert jnp.allclose(out2, ref2, atol=2e-2, rtol=2e-2)

    print("KERNEL_OK")
</pallas_src>

<mosaic_0001>
module attributes {stable_mosaic.version = 11 : i64} {
  func.func @_mlp_kernel(%arg0: i32, %arg1: memref<8x200xf32, #tpu.memory_space<vmem>>, %arg2: memref<200x128xbf16, #tpu.memory_space<vmem>>, %arg3: memref<1x128xf32, #tpu.memory_space<vmem>>, %arg4: memref<128x128xbf16, #tpu.memory_space<vmem>>, %arg5: memref<1x128xf32, #tpu.memory_space<vmem>>, %arg6: memref<128x2xbf16, #tpu.memory_space<vmem>>, %arg7: memref<1x2xf32, #tpu.memory_space<vmem>>, %arg8: memref<8x2xf32, #tpu.memory_space<vmem>>) attributes {dimension_semantics = [#tpu.dimension_semantics<parallel>], iteration_bounds = array<i64: 1>, scalar_prefetch = 0 : i64, scratch_operands = 0 : i64, tpu.core_type = #tpu.core_type<tc>, window_params = [{transform_indices = @transform_0, window_bounds = array<i64: 8, 200>}, {pipeline_mode = #tpu.pipeline_mode<synchronous>, transform_indices = @transform_1, window_bounds = array<i64: 200, 128>}, {pipeline_mode = #tpu.pipeline_mode<synchronous>, transform_indices = @transform_2, window_bounds = array<i64: 1, 128>}, {pipeline_mode = #tpu.pipeline_mode<synchronous>, transform_indices = @transform_3, window_bounds = array<i64: 128, 128>}, {pipeline_mode = #tpu.pipeline_mode<synchronous>, transform_indices = @transform_4, window_bounds = array<i64: 1, 128>}, {pipeline_mode = #tpu.pipeline_mode<synchronous>, transform_indices = @transform_5, window_bounds = array<i64: 128, 2>}, {pipeline_mode = #tpu.pipeline_mode<synchronous>, transform_indices = @transform_6, window_bounds = array<i64: 1, 2>}, {transform_indices = @transform_7, window_bounds = array<i64: 8, 2>}]} {
    %c0 = arith.constant 0 : index
    %c0_0 = arith.constant 0 : index
    %0 = vector.load %arg1[%c0, %c0_0] : memref<8x200xf32, #tpu.memory_space<vmem>>, vector<8x200xf32>
    %1 = arith.truncf %0 : vector<8x200xf32> to vector<8x200xbf16>
    %c0_1 = arith.constant 0 : index
    %c0_2 = arith.constant 0 : index
    %2 = vector.load %arg2[%c0_1, %c0_2] : memref<200x128xbf16, #tpu.memory_space<vmem>>, vector<200x128xbf16>
    %cst = arith.constant dense<0.000000e+00> : vector<8x128xf32>
    %3 = tpu.matmul %1, %2, %cst {dimension_numbers = #tpu.dot_dimension_numbers<[1], [0], [0], [1], [0, 0, 1, 1], [], []>} : vector<8x200xbf16>, vector<200x128xbf16>, vector<8x128xf32> -> vector<8x128xf32>
    %c0_3 = arith.constant 0 : index
    %c0_4 = arith.constant 0 : index
    %4 = vector.load %arg3[%c0_3, %c0_4] : memref<1x128xf32, #tpu.memory_space<vmem>>, vector<1x128xf32>
    %5 = vector.broadcast %4 : vector<1x128xf32> to vector<8x128xf32>
    %6 = arith.addf %3, %5 : vector<8x128xf32>
    %7 = arith.truncf %6 : vector<8x128xf32> to vector<8x128xbf16>
    %8 = math.tanh %7 : vector<8x128xbf16>
    %c0_5 = arith.constant 0 : index
    %c0_6 = arith.constant 0 : index
    %9 = vector.load %arg4[%c0_5, %c0_6] : memref<128x128xbf16, #tpu.memory_space<vmem>>, vector<128x128xbf16>
    %cst_7 = arith.constant dense<0.000000e+00> : vector<8x128xf32>
    %10 = tpu.matmul %8, %9, %cst_7 {dimension_numbers = #tpu.dot_dimension_numbers<[1], [0], [0], [1], [0, 0, 1, 1], [], []>} : vector<8x128xbf16>, vector<128x128xbf16>, vector<8x128xf32> -> vector<8x128xf32>
    %c0_8 = arith.constant 0 : index
    %c0_9 = arith.constant 0 : index
    %11 = vector.load %arg5[%c0_8, %c0_9] : memref<1x128xf32, #tpu.memory_space<vmem>>, vector<1x128xf32>
    %12 = vector.broadcast %11 : vector<1x128xf32> to vector<8x128xf32>
    %13 = arith.addf %10, %12 : vector<8x128xf32>
    %14 = arith.truncf %13 : vector<8x128xf32> to vector<8x128xbf16>
    %15 = math.tanh %14 : vector<8x128xbf16>
    %c0_10 = arith.constant 0 : index
    %c0_11 = arith.constant 0 : index
    %16 = vector.load %arg6[%c0_10, %c0_11] : memref<128x2xbf16, #tpu.memory_space<vmem>>, vector<128x2xbf16>
    %cst_12 = arith.constant dense<0.000000e+00> : vector<8x2xf32>
    %17 = tpu.matmul %15, %16, %cst_12 {dimension_numbers = #tpu.dot_dimension_numbers<[1], [0], [0], [1], [0, 0, 1, 1], [], []>} : vector<8x128xbf16>, vector<128x2xbf16>, vector<8x2xf32> -> vector<8x2xf32>
    %c0_13 = arith.constant 0 : index
    %c0_14 = arith.constant 0 : index
    %18 = vector.load %arg7[%c0_13, %c0_14] : memref<1x2xf32, #tpu.memory_space<vmem>>, vector<1x2xf32>
    %19 = vector.broadcast %18 : vector<1x2xf32> to vector<8x2xf32>
    %20 = arith.addf %17, %19 : vector<8x2xf32>
    %c0_15 = arith.constant 0 : index
    %c0_16 = arith.constant 0 : index
    %21 = vector.load %arg8[%c0_15, %c0_16] : memref<8x2xf32, #tpu.memory_space<vmem>>, vector<8x2xf32>
    tpu.vector_store %arg8[%c0_15, %c0_16], %20 {strides = array<i32>} : memref<8x2xf32, #tpu.memory_space<vmem>>, vector<8x2xf32>,
    return
  }
  func.func @transform_0(%arg0: i32) -> (i32, i32) {
    %c0_i32 = arith.constant 0 : i32
    %c0_i32_0 = arith.constant 0 : i32
    return %arg0, %c0_i32 : i32, i32
  }
  func.func @transform_1(%arg0: i32) -> (i32, i32) {
    %c0_i32 = arith.constant 0 : i32
    %c0_i32_0 = arith.constant 0 : i32
    %c0_i32_1 = arith.constant 0 : i32
    return %c0_i32, %c0_i32_0 : i32, i32
  }
  func.func @transform_2(%arg0: i32) -> (i32, i32) {
    %c0_i32 = arith.constant 0 : i32
    %c0_i32_0 = arith.constant 0 : i32
    %c0_i32_1 = arith.constant 0 : i32
    return %c0_i32, %c0_i32_0 : i32, i32
  }
  func.func @transform_3(%arg0: i32) -> (i32, i32) {
    %c0_i32 = arith.constant 0 : i32
    %c0_i32_0 = arith.constant 0 : i32
    %c0_i32_1 = arith.constant 0 : i32
    return %c0_i32, %c0_i32_0 : i32, i32
  }
  func.func @transform_4(%arg0: i32) -> (i32, i32) {
    %c0_i32 = arith.constant 0 : i32
    %c0_i32_0 = arith.constant 0 : i32
    %c0_i32_1 = arith.constant 0 : i32
    return %c0_i32, %c0_i32_0 : i32, i32
  }
  func.func @transform_5(%arg0: i32) -> (i32, i32) {
    %c0_i32 = arith.constant 0 : i32
    %c0_i32_0 = arith.constant 0 : i32
    %c0_i32_1 = arith.constant 0 : i32
    return %c0_i32, %c0_i32_0 : i32, i32
  }
  func.func @transform_6(%arg0: i32) -> (i32, i32) {
    %c0_i32 = arith.constant 0 : i32
    %c0_i32_0 = arith.constant 0 : i32
    %c0_i32_1 = arith.constant 0 : i32
    return %c0_i32, %c0_i32_0 : i32, i32
  }
  func.func @transform_7(%arg0: i32) -> (i32, i32) {
    %c0_i32 = arith.constant 0 : i32
    %c0_i32_0 = arith.constant 0 : i32
    return %arg0, %c0_i32 : i32, i32
  }
}

</mosaic_0001>

<llo_original>
// kernel: tpu_custom_call.1
$region0: #{tpu_custom_call.1}
  #allocation0 [shape = 'u32[]', space=smem, size = 0x4, offset = 0x4, fixed_abs, tag = 'smem constant byte address 0x4 - core index']
  #allocation1 [shape = 'u32[144,128]{1,0:T(1,128)}', space=vmem, size = 0x12000, scoped, tag = 'internal scratch']
  %s0 = inlined_call_operand.hbm [shape: f32[8,200], index: 0, kind: input, shape index: {}]
  %s1 = inlined_call_operand.hbm [shape: bf16[200,128], index: 1, kind: input, shape index: {}]
  %s2 = inlined_call_operand.vmem [shape: f32[1,128], index: 2, kind: input, shape index: {}]
  %s3 = inlined_call_operand.vmem [shape: bf16[128,128], index: 3, kind: input, shape index: {}]
  %s4 = inlined_call_operand.vmem [shape: f32[1,128], index: 4, kind: input, shape index: {}]
  %s5 = inlined_call_operand.vmem [shape: bf16[128,2], index: 5, kind: input, shape index: {}]
  %s6 = inlined_call_operand.vmem [shape: f32[1,2], index: 6, kind: input, shape index: {}]
  %s7 = inlined_call_operand.vmem [shape: f32[8,2], index: 7, kind: output, shape index: {}]
  %s8 = sld [smem:[#allocation0]]
  $region46: #{tpu_custom_call.1} parent=0
    _
  %s10 = ssub.s32 1, %s8
  %s11 = scalar_select 0, %s10, %s8
  $region1: #{tpu_custom_call.1} parent=0
    #allocation2 [shape = 'u8[8192]{0}', space=vmem, size = 0x2000, scoped, tag = 'input window, operand 0, single buffered']
    #allocation3 [shape = 's32[1]{0}', space=sflag, size = 0x4, scoped, tag = 'scoped memory for tpu_custom_call.1']
    #allocation4 [shape = 'u8[51200]{0}', space=vmem, size = 0xc800, scoped, tag = 'input window, operand 1, single buffered']
    #allocation5 [shape = 's32[1]{0}', space=sflag, size = 0x4, scoped, tag = 'scoped memory for tpu_custom_call.1']
    %12 = vsyncpa [#allocation3], 0
    %13 = vsyncpa [#allocation5], 0
    // Predicated region
    $region2: #{tpu_custom_call.1} parent=1 // pred_check
      _
    $region3: #{tpu_custom_call.1} parent=1 // pred_check_branch
      %15 = sbr.rel (0) target = $region5
    $region4: #{tpu_custom_call.1} parent=1 // pred_region
      %s17 = ssub.s32 256, 256
      %18 = vsyncadd [#allocation3], %s17
      %s20 = sshll.u32 [#allocation2], 4
      %s21 = int_to_ptr.vmem [resolvable:$true] %s20
      %23 = dma.hbm_to_vmem [thread:$0]  %s0, 256, %s21, [#allocation3]
    $region5: #{tpu_custom_call.1} parent=1 // pred_fallthru
      _
    // Predicated region
    $region6: #{tpu_custom_call.1} parent=1 // pred_check
      _
    $region7: #{tpu_custom_call.1} parent=1 // pred_check_branch
      %25 = sbr.rel (0) target = $region9
    $region8: #{tpu_custom_call.1} parent=1 // pred_region
      %s27 = ssub.s32 1600, 1600
      %28 = vsyncadd [#allocation5], %s27
      %s29 = sshll.u32 [#allocation4], 4
      %s30 = int_to_ptr.vmem [resolvable:$true] %s29
      %35 = dma.hbm_to_vmem [thread:$0]  %s1, 1600, %s30, [#allocation5], 64, 64, 4
    $region9: #{tpu_custom_call.1} parent=1 // pred_fallthru
      _
    // Predicated region
    $region10: #{tpu_custom_call.1} parent=1 // pred_check
      _
    $region11: #{tpu_custom_call.1} parent=1 // pred_check_branch
      %37 = sbr.rel (0) target = $region13
    $region12: #{tpu_custom_call.1} parent=1 // pred_region
      _
    $region13: #{tpu_custom_call.1} parent=1 // pred_fallthru
      _
    // Predicated region
    $region14: #{tpu_custom_call.1} parent=1 // pred_check
      _
    $region15: #{tpu_custom_call.1} parent=1 // pred_check_branch
      %39 = sbr.rel (0) target = $region17
    $region16: #{tpu_custom_call.1} parent=1 // pred_region
      _
    $region17: #{tpu_custom_call.1} parent=1 // pred_fallthru
      _
    // Predicated region
    $region18: #{tpu_custom_call.1} parent=1 // pred_check
      _
    $region19: #{tpu_custom_call.1} parent=1 // pred_check_branch
      %41 = sbr.rel (0) target = $region21
    $region20: #{tpu_custom_call.1} parent=1 // pred_region
      _
    $region21: #{tpu_custom_call.1} parent=1 // pred_fallthru
      _
    // Predicated region
    $region22: #{tpu_custom_call.1} parent=1 // pred_check
      _
    $region23: #{tpu_custom_call.1} parent=1 // pred_check_branch
      %43 = sbr.rel (0) target = $region25
    $region24: #{tpu_custom_call.1} parent=1 // pred_region
      _
    $region25: #{tpu_custom_call.1} parent=1 // pred_fallthru
      _
    // Predicated region
    $region26: #{tpu_custom_call.1} parent=1 // pred_check
      _
    $region27: #{tpu_custom_call.1} parent=1 // pred_check_branch
      %45 = sbr.rel (0) target = $region29
    $region28: #{tpu_custom_call.1} parent=1 // pred_region
      _
    $region29: #{tpu_custom_call.1} parent=1 // pred_fallthru
      _
    // Predicated region
    $region30: #{tpu_custom_call.1} parent=1 // pred_check
      _
    $region31: #{tpu_custom_call.1} parent=1 // pred_check_branch
      %47 = sbr.rel (0) target = $region33
    $region32: #{tpu_custom_call.1} parent=1 // pred_region
      %48 = dma.done [#allocation3], 256
    $region33: #{tpu_custom_call.1} parent=1 // pred_fallthru
      _
    // Predicated region
    $region34: #{tpu_custom_call.1} parent=1 // pred_check
      _
    $region35: #{tpu_custom_call.1} parent=1 // pred_check_branch
      %50 = sbr.rel (0) target = $region37
    $region36: #{tpu_custom_call.1} parent=1 // pred_region
      %51 = dma.done [#allocation5], 1600
    $region37: #{tpu_custom_call.1} parent=1 // pred_fallthru
      _
    %v53 = vld [vmem:[#allocation2] sm:$0xff]
    %v54 = vld [vmem:[#allocation2 + $0x8] sm:$0xff]
    %v55 = vpack.c.bf16 %v53, %v53
    %v56 = vpack.c.bf16 %v54, %v54
    %v57 = vld [vmem:[#allocation4] sm:$0xf]
    %v58 = vld [vmem:[#allocation4 + $0x4] sm:$0xf]
    %v59 = vld [vmem:[#allocation4 + $0x8] sm:$0xf]
    %v60 = vld [vmem:[#allocation4 + $0xc] sm:$0xf]
    %v61 = vld [vmem:[#allocation4 + $0x10] sm:$0xf]
    %v62 = vld [vmem:[#allocation4 + $0x14] sm:$0xf]
    %v63 = vld [vmem:[#allocation4 + $0x18] sm:$0xf]
    %v64 = vld [vmem:[#allocation4 + $0x1c] sm:$0xf]
    %v65 = vld [vmem:[#allocation4 + $0x20] sm:$0xf]
    %v66 = vld [vmem:[#allocation4 + $0x24] sm:$0xf]
    %v67 = vld [vmem:[#allocation4 + $0x28] sm:$0xf]
    %v68 = vld [vmem:[#allocation4 + $0x2c] sm:$0xf]
    %v69 = vld [vmem:[#allocation4 + $0x30] sm:$0xf]
    %v70 = vld [vmem:[#allocation4 + $0x34] sm:$0xf]
    %v71 = vld [vmem:[#allocation4 + $0x38] sm:$0xf]
    %v72 = vld [vmem:[#allocation4 + $0x3c] sm:$0xf]
    %v73 = vld [vmem:[#allocation4 + $0x40] sm:$0xf]
    %v74 = vld [vmem:[#allocation4 + $0x44] sm:$0xf]
    %v75 = vld [vmem:[#allocation4 + $0x48] sm:$0xf]
    %v76 = vld [vmem:[#allocation4 + $0x4c] sm:$0xf]
    %v77 = vld [vmem:[#allocation4 + $0x50] sm:$0xf]
    %v78 = vld [vmem:[#allocation4 + $0x54] sm:$0xf]
    %v79 = vld [vmem:[#allocation4 + $0x58] sm:$0xf]
    %v80 = vld [vmem:[#allocation4 + $0x5c] sm:$0xf]
    %v81 = vld [vmem:[#allocation4 + $0x60] sm:$0xf]
    %v82 = vld [vmem:[%s2] sm:$0x1]
    %v84 = vlaneseq
    %v85 = vshrl.u32 %v84, 7
    %v86 = vsub.s32 0, %v85
    %v87 = vrot.slane %v82, %v86
    %v114 = vunpack.c.l.b16 %v57
    %v115 = vunpack.c.l.b16 %v58
    %v116 = vunpack.c.l.b16 %v59
    %v117 = vunpack.c.l.b16 %v60
    %v118 = vunpack.c.l.b16 %v61
    %v119 = vunpack.c.l.b16 %v62
    %v120 = vunpack.c.l.b16 %v63
    %v121 = vunpack.c.l.b16 %v64
    %v122 = vunpack.c.l.b16 %v65
    %v123 = vunpack.c.l.b16 %v66
    %v124 = vunpack.c.l.b16 %v67
    %v125 = vunpack.c.l.b16 %v68
    %v126 = vunpack.c.l.b16 %v69
    %v127 = vunpack.c.l.b16 %v70
    %v128 = vunpack.c.l.b16 %v71
    %v129 = vunpack.c.l.b16 %v72
    %v130 = vunpack.c.l.b16 %v73
    %v131 = vunpack.c.l.b16 %v74
    %v132 = vunpack.c.l.b16 %v75
    %v133 = vunpack.c.l.b16 %v76
    %v134 = vunpack.c.l.b16 %v77
    %v135 = vunpack.c.l.b16 %v78
    %v136 = vunpack.c.l.b16 %v79
    %v137 = vunpack.c.l.b16 %v80
    %v138 = vunpack.c.l.b16 %v81
    %v139 = vpack.c.b16 %v115, %v114
    %v140 = vpack.c.b16 %v117, %v116
    %v141 = vpack.c.b16 %v119, %v118
    %v142 = vpack.c.b16 %v121, %v120
    %v143 = vpack.c.b16 %v123, %v122
    %v144 = vpack.c.b16 %v125, %v124
    %v145 = vpack.c.b16 %v127, %v126
    %v146 = vpack.c.b16 %v129, %v128
    %v147 = vpack.c.b16 %v131, %v130
    %v148 = vpack.c.b16 %v133, %v132
    %v149 = vpack.c.b16 %v135, %v134
    %v150 = vpack.c.b16 %v137, %v136
    %v151 = vpack.c.b16 %v138, %v138
    %vm164 = vcmask 588800
    %v166 = vsel %vm164, %v56, 0
    %vm168 = vcmask 1043456
    %v170 = vsel %vm168, %v151, 0
    %172 = vmatprep.subr.bf16.mxu0 0
    %173 = vmatpush1.bf16.msra.mxu0 %v139
    %174 = vmatprep.subr.bf16.mxu0 0
    %175 = vmatpush1.bf16.msra.mxu0 %v140
    %176 = vmatprep.subr.bf16.mxu0 0
    %177 = vmatpush1.bf16.msra.mxu0 %v141
    %178 = vmatprep.subr.bf16.mxu0 0
    %179 = vmatpush1.bf16.msra.mxu0 %v142
    %180 = vmatprep.subr.bf16.mxu0 0
    %181 = vmatpush1.bf16.msra.mxu0 %v143
    %182 = vmatprep.subr.bf16.mxu0 0
    %183 = vmatpush1.bf16.msra.mxu0 %v144
    %184 = vmatprep.subr.bf16.mxu0 0
    %185 = vmatpush1.bf16.msra.mxu0 %v145
    %186 = vmatprep.subr.bf16.mxu0 0
    %187 = vmatpush1.bf16.msra.mxu0 %v146
    %188 = vmatprep.subr.bf16.mxu0 0
    %189 = vmatpush1.bf16.msra.mxu0 %v147
    %190 = vmatprep.subr.bf16.mxu0 0
    %191 = vmatpush1.bf16.msra.mxu0 %v148
    %192 = vmatprep.subr.bf16.mxu0 0
    %193 = vmatpush1.bf16.msra.mxu0 %v149
    %194 = vmatprep.subr.bf16.mxu0 0
    %195 = vmatpush1.bf16.msra.mxu0 %v150
    %196 = vmatprep.subr.bf16.mxu0 0
    %197 = vmatpush1.bf16.msra.mxu0 %v170
    %198 = vmatprep.subr.bf16.mxu0 0
    %199 = vmatpush1.bf16.msra.mxu0 0
    %200 = vmatprep.subr.bf16.mxu0 0
    %201 = vmatpush1.bf16.msra.mxu0 0
    %202 = vmatprep.subr.bf16.mxu0 0
    %203 = vmatpush1.bf16.msra.mxu0 0
    %204 = vmatprep.mubr.bf16.mxu0 %v166
    %205 = vmatmul.mubr.bf16.gmra.mrb[0].mxu0 %v55
    %v206 = vpop.f32.mrb[0].mxu0
    %v207 = vadd.f32 %v87, %v206
    %v208 = vpop.f32.mrb[0].mxu0
    %v209 = vpop.f32.mrb[0].mxu0
    %v210 = vpop.f32.mrb[0].mxu0
    %211 = vdwg.mxu0
    %v212 = vpack.c.bf16 %v207, %v207
    %v213 = vtanh.bf16.pop %v212
    %v214 = vld [vmem:[%s3] sm:$0xf]
    %v215 = vld [vmem:[%s3 + $0x4] sm:$0xf]
    %v216 = vld [vmem:[%s3 + $0x8] sm:$0xf]
    %v217 = vld [vmem:[%s3 + $0xc] sm:$0xf]
    %v218 = vld [vmem:[%s3 + $0x10] sm:$0xf]
    %v219 = vld [vmem:[%s3 + $0x14] sm:$0xf]
    %v220 = vld [vmem:[%s3 + $0x18] sm:$0xf]
    %v221 = vld [vmem:[%s3 + $0x1c] sm:$0xf]
    %v222 = vld [vmem:[%s3 + $0x20] sm:$0xf]
    %v223 = vld [vmem:[%s3 + $0x24] sm:$0xf]
    %v224 = vld [vmem:[%s3 + $0x28] sm:$0xf]
    %v225 = vld [vmem:[%s3 + $0x2c] sm:$0xf]
    %v226 = vld [vmem:[%s3 + $0x30] sm:$0xf]
    %v227 = vld [vmem:[%s3 + $0x34] sm:$0xf]
    %v228 = vld [vmem:[%s3 + $0x38] sm:$0xf]
    %v229 = vld [vmem:[%s3 + $0x3c] sm:$0xf]
    %v230 = vld [vmem:[%s4] sm:$0x1]
    %v232 = vlaneseq
    %v233 = vshrl.u32 %v232, 7
    %v234 = vsub.s32 0, %v233
    %v235 = vrot.slane %v230, %v234
    %v253 = vunpack.c.l.b16 %v214
    %v254 = vunpack.c.l.b16 %v215
    %v255 = vunpack.c.l.b16 %v216
    %v256 = vunpack.c.l.b16 %v217
    %v257 = vunpack.c.l.b16 %v218
    %v258 = vunpack.c.l.b16 %v219
    %v259 = vunpack.c.l.b16 %v220
    %v260 = vunpack.c.l.b16 %v221
    %v261 = vunpack.c.l.b16 %v222
    %v262 = vunpack.c.l.b16 %v223
    %v263 = vunpack.c.l.b16 %v224
    %v264 = vunpack.c.l.b16 %v225
    %v265 = vunpack.c.l.b16 %v226
    %v266 = vunpack.c.l.b16 %v227
    %v267 = vunpack.c.l.b16 %v228
    %v268 = vunpack.c.l.b16 %v229
    %v269 = vpack.c.b16 %v254, %v253
    %v270 = vpack.c.b16 %v256, %v255
    %v271 = vpack.c.b16 %v258, %v257
    %v272 = vpack.c.b16 %v260, %v259
    %v273 = vpack.c.b16 %v262, %v261
    %v274 = vpack.c.b16 %v264, %v263
    %v275 = vpack.c.b16 %v266, %v265
    %v276 = vpack.c.b16 %v268, %v267
    %285 = vmatprep.subr.bf16.mxu0 0
    %286 = vmatpush1.bf16.msra.mxu0 %v269
    %287 = vmatprep.subr.bf16.mxu0 0
    %288 = vmatpush1.bf16.msra.mxu0 %v270
    %289 = vmatprep.subr.bf16.mxu0 0
    %290 = vmatpush1.bf16.msra.mxu0 %v271
    %291 = vmatprep.subr.bf16.mxu0 0
    %292 = vmatpush1.bf16.msra.mxu0 %v272
    %293 = vmatprep.subr.bf16.mxu0 0
    %294 = vmatpush1.bf16.msra.mxu0 %v273
    %295 = vmatprep.subr.bf16.mxu0 0
    %296 = vmatpush1.bf16.msra.mxu0 %v274
    %297 = vmatprep.subr.bf16.mxu0 0
    %298 = vmatpush1.bf16.msra.mxu0 %v275
    %299 = vmatprep.subr.bf16.mxu0 0
    %300 = vmatpush1.bf16.msra.mxu0 %v276
    %301 = vmatprep.subr.bf16.mxu0 0
    %302 = vmatpush1.bf16.msra.mxu0 0
    %303 = vmatprep.subr.bf16.mxu0 0
    %304 = vmatpush1.bf16.msra.mxu0 0
    %305 = vmatprep.subr.bf16.mxu0 0
    %306 = vmatpush1.bf16.msra.mxu0 0
    %307 = vmatprep.subr.bf16.mxu0 0
    %308 = vmatpush1.bf16.msra.mxu0 0
    %309 = vmatprep.subr.bf16.mxu0 0
    %310 = vmatpush1.bf16.msra.mxu0 0
    %311 = vmatprep.subr.bf16.mxu0 0
    %312 = vmatpush1.bf16.msra.mxu0 0
    %313 = vmatprep.subr.bf16.mxu0 0
    %314 = vmatpush1.bf16.msra.mxu0 0
    %315 = vmatprep.subr.bf16.mxu0 0
    %316 = vmatpush1.bf16.msra.mxu0 0
    %317 = vmatprep.mubr.bf16.mxu0 0
    %318 = vmatmul.mubr.bf16.gmra.mrb[0].mxu0 %v213
    %v319 = vpop.f32.mrb[0].mxu0
    %v320 = vadd.f32 %v235, %v319
    %v321 = vpop.f32.mrb[0].mxu0
    %v322 = vpop.f32.mrb[0].mxu0
    %v323 = vpop.f32.mrb[0].mxu0
    %324 = vdwg.mxu0
    %v325 = vpack.c.bf16 %v320, %v320
    %v326 = vtanh.bf16.pop %v325
    %v327 = vld [vmem:[%s5] sm:$0xf]
    %v328 = vld [vmem:[%s5 + $0x4] sm:$0xf]
    %v329 = vld [vmem:[%s5 + $0x8] sm:$0xf]
    %v330 = vld [vmem:[%s5 + $0xc] sm:$0xf]
    %v331 = vld [vmem:[%s5 + $0x10] sm:$0xf]
    %v332 = vld [vmem:[%s5 + $0x14] sm:$0xf]
    %v333 = vld [vmem:[%s5 + $0x18] sm:$0xf]
    %v334 = vld [vmem:[%s5 + $0x1c] sm:$0xf]
    %v335 = vld [vmem:[%s5 + $0x20] sm:$0xf]
    %v336 = vld [vmem:[%s5 + $0x24] sm:$0xf]
    %v337 = vld [vmem:[%s5 + $0x28] sm:$0xf]
    %v338 = vld [vmem:[%s5 + $0x2c] sm:$0xf]
    %v339 = vld [vmem:[%s5 + $0x30] sm:$0xf]
    %v340 = vld [vmem:[%s5 + $0x34] sm:$0xf]
    %v341 = vld [vmem:[%s5 + $0x38] sm:$0xf]
    %v342 = vld [vmem:[%s5 + $0x3c] sm:$0xf]
    %v343 = vld [vmem:[%s6] sm:$0x1]
    %v345 = vlaneseq
    %v346 = vshrl.u32 %v345, 7
    %v347 = vsub.s32 0, %v346
    %v348 = vrot.slane %v343, %v347
    %v366 = vunpack.c.l.b16 %v327
    %v367 = vunpack.c.l.b16 %v328
    %v368 = vunpack.c.l.b16 %v329
    %v369 = vunpack.c.l.b16 %v330
    %v370 = vunpack.c.l.b16 %v331
    %v371 = vunpack.c.l.b16 %v332
    %v372 = vunpack.c.l.b16 %v333
    %v373 = vunpack.c.l.b16 %v334
    %v374 = vunpack.c.l.b16 %v335
    %v375 = vunpack.c.l.b16 %v336
    %v376 = vunpack.c.l.b16 %v337
    %v377 = vunpack.c.l.b16 %v338
    %v378 = vunpack.c.l.b16 %v339
    %v379 = vunpack.c.l.b16 %v340
    %v380 = vunpack.c.l.b16 %v341
    %v381 = vunpack.c.l.b16 %v342
    %v382 = vpack.c.b16 %v367, %v366
    %v383 = vpack.c.b16 %v369, %v368
    %v384 = vpack.c.b16 %v371, %v370
    %v385 = vpack.c.b16 %v373, %v372
    %v386 = vpack.c.b16 %v375, %v374
    %v387 = vpack.c.b16 %v377, %v376
    %v388 = vpack.c.b16 %v379, %v378
    %v389 = vpack.c.b16 %v381, %v380
    %398 = vmatprep.subr.bf16.mxu0 0
    %399 = vmatpush1.bf16.msra.mxu0 %v382
    %400 = vmatprep.subr.bf16.mxu0 0
    %401 = vmatpush1.bf16.msra.mxu0 %v383
    %402 = vmatprep.subr.bf16.mxu0 0
    %403 = vmatpush1.bf16.msra.mxu0 %v384
    %404 = vmatprep.subr.bf16.mxu0 0
    %405 = vmatpush1.bf16.msra.mxu0 %v385
    %406 = vmatprep.subr.bf16.mxu0 0
    %407 = vmatpush1.bf16.msra.mxu0 %v386
    %408 = vmatprep.subr.bf16.mxu0 0
    %409 = vmatpush1.bf16.msra.mxu0 %v387
    %410 = vmatprep.subr.bf16.mxu0 0
    %411 = vmatpush1.bf16.msra.mxu0 %v388
    %412 = vmatprep.subr.bf16.mxu0 0
    %413 = vmatpush1.bf16.msra.mxu0 %v389
    %414 = vmatprep.subr.bf16.mxu0 0
    %415 = vmatpush1.bf16.msra.mxu0 0
    %416 = vmatprep.subr.bf16.mxu0 0
    %417 = vmatpush1.bf16.msra.mxu0 0
    %418 = vmatprep.subr.bf16.mxu0 0
    %419 = vmatpush1.bf16.msra.mxu0 0
    %420 = vmatprep.subr.bf16.mxu0 0
    %421 = vmatpush1.bf16.msra.mxu0 0
    %422 = vmatprep.subr.bf16.mxu0 0
    %423 = vmatpush1.bf16.msra.mxu0 0
    %424 = vmatprep.subr.bf16.mxu0 0
    %425 = vmatpush1.bf16.msra.mxu0 0
    %426 = vmatprep.subr.bf16.mxu0 0
    %427 = vmatpush1.bf16.msra.mxu0 0
    %428 = vmatprep.subr.bf16.mxu0 0
    %429 = vmatpush1.bf16.msra.mxu0 0
    %430 = vmatprep.mubr.bf16.mxu0 0
    %431 = vmatmul.mubr.bf16.gmra.mrb[0].mxu0 %v326
    %v432 = vpop.f32.mrb[0].mxu0
    %v433 = vadd.f32 %v348, %v432
    %v434 = vpop.f32.mrb[0].mxu0
    %v435 = vpop.f32.mrb[0].mxu0
    %v436 = vpop.f32.mrb[0].mxu0
    %437 = vdwg.mxu0
    %vm438 = vcmask 15360
    %439 = vst.msk [vmem:[%s7] sm:$0xff] %vm438, %v433
    // Predicated region
    $region38: #{tpu_custom_call.1} parent=1 // pred_check
      _
    $region39: #{tpu_custom_call.1} parent=1 // pred_check_branch
      %441 = sbr.rel (0) target = $region41
    $region40: #{tpu_custom_call.1} parent=1 // pred_region
      _
    $region41: #{tpu_custom_call.1} parent=1 // pred_fallthru
      _
    // Predicated region
    $region42: #{tpu_custom_call.1} parent=1 // pred_check
      _
    $region43: #{tpu_custom_call.1} parent=1 // pred_check_branch
      %443 = sbr.rel (0) target = $region45
    $region44: #{tpu_custom_call.1} parent=1 // pred_region
      _
    $region45: #{tpu_custom_call.1} parent=1 // pred_fallthru
      _
    %444 = vsyncpa [#allocation3], 1
    %445 = vsyncpa [#allocation5], 1

</llo_original>
